<compile_context>
chip_gen: v6e
topology: v6e:2x2x1
jax: 0.10.0
libtpu: 0.0.40
codegen_flags: <defaults>
</compile_context>

<pallas_src>
import functools

import jax
import jax.numpy as jnp
from jax.experimental import pallas as pl
from jax.experimental.pallas import tpu as pltpu


def _round_up(x, m):
    return (x + m - 1) // m * m


# ---------------------------------------------------------------------------
# N-D path (input.dim() > 2): classes on sublanes, spatial (H*W) on lanes.
# ---------------------------------------------------------------------------
def _focal_loss_nd_kernel(x_ref, t_ref, out_ref, *, gamma, hw, t_hw, acc_w,
                          n_j, need_mask):
    """One (1, C, t_hw) logits tile; accumulate a (1, 1, acc_w) partial sum."""
    j = pl.program_id(2)

    # Per-(batch, split) accumulator = the output block itself (resident
    # across the inner "arbitrary" axis).
    @pl.when(j == 0)
    def _():
        out_ref[...] = jnp.zeros_like(out_ref)

    x = x_ref[...].astype(jnp.float32)              # (1, C, T) logits
    t = t_ref[...]                                  # (1, 1, T) int32 targets
    c = x.shape[1]

    # Numerically stable log-softmax pieces over the class (sublane) axis,
    # gathered at the target class, without materializing log_softmax.
    m = jnp.max(x, axis=1, keepdims=True)           # (1, 1, T)
    shifted = x - m                                 # (1, C, T)
    e = jnp.exp(shifted)                            # (1, C, T)  (C exps/pt)
    sum_e = jnp.sum(e, axis=1, keepdims=True)       # (1, 1, T)

    # Tiny (1, C, 1) class iota broadcast against the (1, 1, T) target —
    # no full-tile int32 iota temp.
    cls = jax.lax.broadcasted_iota(jnp.int32, (1, c, 1), 1)
    is_t = cls == t                                 # (1, C, T) bool

    shifted_t = jnp.sum(jnp.where(is_t, shifted, 0.0), axis=1, keepdims=True)
    e_t = jnp.sum(jnp.where(is_t, e, 0.0), axis=1, keepdims=True)

    logpt = shifted_t - jnp.log(sum_e)              # (1, 1, T)
    pt = e_t / sum_e                                # reuse exp(shifted); no 2nd exp
    omp = jnp.maximum(1.0 - pt, 0.0)                # 1 - pt, clamped >= 0

    # Static specialization on gamma: avoids EUP pow and the 0**0 NaN hazard.
    if gamma == 0.0:
        loss = -logpt
    elif float(gamma).is_integer() and 0 < int(gamma) <= 16:
        w = omp
        for _ in range(int(gamma) - 1):
            w = w * omp
        loss = -w * logpt
    else:
        loss = -jnp.power(omp, jnp.float32(gamma)) * loss_placeholder if False else \
               -jnp.power(omp, jnp.float32(gamma)) * logpt

    # Mask lanes past the true spatial extent (compiled in only when the grid
    # over-covers HW).  jnp.where, not multiply, so OOB garbage cannot leak
    # NaN.  Also neutralizes fully out-of-range (index-clamped) tiles.
    if need_mask:
        tile = pl.program_id(1) * n_j + j
        lane = jax.lax.broadcasted_iota(jnp.int32, loss.shape, 2)
        loss = jnp.where(tile * t_hw + lane < hw, loss, 0.0)

    # Fold the t_hw-lane loss into an acc_w(=128)-lane partial sum with
    # aligned lane slices + VPU adds (no reshape / relayout).
    if acc_w == t_hw:
        partial = loss
    else:
        partial = loss[:, :, 0:acc_w]
        for k in range(1, t_hw // acc_w):
            partial = partial + loss[:, :, k * acc_w:(k + 1) * acc_w]

    out_ref[...] += partial


def _focal_loss_nd(x3d, t3d, gamma, size_average, tile_bytes):
    n, c, hw = x3d.shape
    itemsize = jnp.dtype(x3d.dtype).itemsize
    # Sublane packing granularity: 8 rows for 4-byte, 16 for 2-byte, 32 for
    # 1-byte dtypes.  Padded VMEM bytes per lane of one logits block:
    pack = max(1, 32 // (8 * itemsize)) * 8
    lane_bytes = _round_up(c, pack) * itemsize

    # tile_bytes budgets the PADDED logits block per pipeline buffer.  Total
    # double-buffered inputs ~= 2*tile_bytes (logits) + 2*32*t_hw (padded
    # int32 target) + a few elementwise temps; with the 512 KiB default and
    # C=4 that is ~3-4 MiB — inside every chip's default scoped-VMEM limit.
    max_lanes = max(128, (tile_bytes // lane_bytes) // 128 * 128)
    t_hw = hw if hw <= max_lanes else max_lanes
    n_tiles = pl.cdiv(hw, t_hw)

    # Split the lane-tile range into two "parallel" halves so both v7x
    # TensorCores get work even when N == 1 (no cost on single-TC chips).
    n_split = 2 if n_tiles >= 2 else 1
    n_j = pl.cdiv(n_tiles, n_split)
    cover = n_split * n_j * t_hw

    # Accumulator width: 128 lanes when the tile folds cleanly, else full tile
    # (only happens for a single full-HW tile that is not a 128 multiple).
    acc_w = 128 if (t_hw > 128 and t_hw % 128 == 0) else t_hw

    kernel = functools.partial(
        _focal_loss_nd_kernel, gamma=gamma, hw=hw, t_hw=t_hw, acc_w=acc_w,
        n_j=n_j, need_mask=(cover != hw))

    last = n_tiles - 1
    # Clamp over-covering tiles onto the last valid block (their contribution
    # is fully masked in-kernel), keeping every DMA in bounds.
    data_map = lambda b, s, j: (b, 0, jnp.minimum(s * n_j + j, last))

    partial_sums = pl.pallas_call(
        kernel,
        out_shape=jax.ShapeDtypeStruct((n * n_split, 1, acc_w), jnp.float32),
        grid_spec=pltpu.PrefetchScalarGridSpec(
            num_scalar_prefetch=0,
            grid=(n, n_split, n_j),
            in_specs=[
                pl.BlockSpec((1, c, t_hw), data_map),
                pl.BlockSpec((1, 1, t_hw), data_map),
            ],
            out_specs=pl.BlockSpec((1, 1, acc_w),
                                   lambda b, s, j: (b * n_split + s, 0, 0)),
        ),
        compiler_params=pltpu.CompilerParams(
            dimension_semantics=("parallel", "parallel", "arbitrary")),
    )(x3d, t3d)

    total = jnp.sum(partial_sums)
    if size_average == 'mean':
        return total / jnp.float32(n * hw)
    return total


# ---------------------------------------------------------------------------
# 2-D path (M, C): rows on sublanes, classes on lanes — no HBM transpose.
# ---------------------------------------------------------------------------
def _focal_loss_2d_kernel(x_ref, t_ref, out_ref, *, gamma, m_rows, t_m):
    x = x_ref[...].astype(jnp.float32)              # (t_m, C)
    t = t_ref[...]                                  # (t_m, 1) int32
    c = x.shape[1]

    m = jnp.max(x, axis=1, keepdims=True)           # lane-axis (XLU) reduce
    shifted = x - m
    e = jnp.exp(shifted)
    sum_e = jnp.sum(e, axis=1, keepdims=True)

    cls = jax.lax.broadcasted_iota(jnp.int32, (1, c), 1)   # lane iota
    is_t = cls == t                                 # (t_m, C) via broadcast

    shifted_t = jnp.sum(jnp.where(is_t, shifted, 0.0), axis=1, keepdims=True)
    e_t = jnp.sum(jnp.where(is_t, e, 0.0), axis=1, keepdims=True)
    logpt = shifted_t - jnp.log(sum_e)
    pt = e_t / sum_e
    omp = jnp.maximum(1.0 - pt, 0.0)

    if gamma == 0.0:
        loss = -logpt
    elif float(gamma).is_integer() and 0 < int(gamma) <= 16:
        w = omp
        for _ in range(int(gamma) - 1):
            w = w * omp
        loss = -w * logpt
    else:
        loss = -jnp.power(omp, jnp.float32(gamma)) * logpt

    # Mask rows past M in the edge block (belt-and-braces; the partial output
    # block would drop them anyway).
    if m_rows % t_m != 0:
        row = jax.lax.broadcasted_iota(jnp.int32, loss.shape, 0)
        loss = jnp.where(pl.program_id(0) * t_m + row < m_rows, loss, 0.0)

    out_ref[...] = loss


def _focal_loss_2d(x2d, t1d, gamma, size_average, tile_rows):
    m_rows, c = x2d.shape
    t2d = t1d.reshape(m_rows, 1)
    if m_rows <= tile_rows:
        t_m = m_rows                                # full dim (any size) OK
    else:
        t_m = max(8, (tile_rows // 8) * 8)          # sublane multiple
    n_i = pl.cdiv(m_rows, t_m)

    kernel = functools.partial(_focal_loss_2d_kernel, gamma=gamma,
                               m_rows=m_rows, t_m=t_m)
    per_row = pl.pallas_call(
        kernel,
        out_shape=jax.ShapeDtypeStruct((m_rows, 1), jnp.float32),
        grid_spec=pltpu.PrefetchScalarGridSpec(
            num_scalar_prefetch=0,
            grid=(n_i,),
            in_specs=[
                pl.BlockSpec((t_m, c), lambda i: (i, 0)),
                pl.BlockSpec((t_m, 1), lambda i: (i, 0)),
            ],
            out_specs=pl.BlockSpec((t_m, 1), lambda i: (i, 0)),
        ),
        compiler_params=pltpu.CompilerParams(
            dimension_semantics=("parallel",)),
    )(x2d, t2d)

    total = jnp.sum(per_row)
    if size_average == 'mean':
        return total / jnp.float32(m_rows)
    return total


# ---------------------------------------------------------------------------
# Public wrapper (matches the torch FocalLoss.forward semantics).
# ---------------------------------------------------------------------------
def focal_loss(logits, target, *, gamma=0.0, size_average='mean',
               tile_bytes=512 * 1024, tile_rows=1024):
    """logits: (N, C, *spatial) or (M, C); target: (N, *spatial) or (M,)."""
    gamma = float(gamma)
    if logits.ndim > 2:
        n, c = logits.shape[0], logits.shape[1]
        hw = 1
        for d in logits.shape[2:]:
            hw *= d
        # Pure view of NCHW memory -- no transpose / copy in HBM.
        x3d = logits.reshape(n, c, hw)
        t3d = target.reshape(n, 1, hw).astype(jnp.int32)
        return _focal_loss_nd(x3d, t3d, gamma, size_average, tile_bytes)
    # 2-D classification: classes stay on lanes, no host-side transpose.
    return _focal_loss_2d(logits, target.astype(jnp.int32), gamma,
                          size_average, tile_rows)


def _focal_loss_ref(logits, target, gamma=0.0, size_average='mean'):
    if logits.ndim > 2:
        c = logits.shape[1]
        x2d = jnp.moveaxis(logits, 1, -1).reshape(-1, c)
    else:
        x2d = logits
    t = target.reshape(-1)
    logp = jax.nn.log_softmax(x2d.astype(jnp.float32), axis=-1)
    logpt = jnp.take_along_axis(logp, t[:, None].astype(jnp.int32), axis=1)[:, 0]
    pt = jnp.exp(logpt)
    loss = -((1.0 - pt) ** gamma) * logpt
    return loss.mean() if size_average == 'mean' else loss.sum()


if __name__ == "__main__":
    key = jax.random.PRNGKey(0)
    k1, k2, k3, k4, k5, k6 = jax.random.split(key, 6)

    # 1) NCHW segmentation-style logits (primary path; single lane tile,
    #    in-kernel 128-lane fold).
    N, C, H, W = 2, 4, 16, 16
    logits = jax.random.normal(k1, (N, C, H, W), dtype=jnp.float32)
    target = jax.random.randint(k2, (N, H, W), 0, C, dtype=jnp.int32)
    for g, mode in ((2.0, 'mean'), (0.0, 'sum')):
        out = jax.block_until_ready(
            focal_loss(logits, target, gamma=g, size_average=mode))
        ref = _focal_loss_ref(logits, target, gamma=g, size_average=mode)
        assert jnp.allclose(out, ref, rtol=2e-5, atol=1e-5), (g, mode, out, ref)

    # 2) Multi-tile + megacore-split + edge-mask path: HW = 23*23 = 529 with a
    #    forced 128-lane tile -> 5 tiles split 2x3; the 6th tile is
    #    index-clamped and fully masked, the 5th is partially masked.
    H2, W2 = 23, 23
    logits2 = jax.random.normal(k3, (N, C, H2, W2), dtype=jnp.float32)
    target2 = jax.random.randint(k4, (N, H2, W2), 0, C, dtype=jnp.int32)
    out2 = jax.block_until_ready(
        focal_loss(logits2, target2, gamma=2.0, size_average='mean',
                   tile_bytes=128 * 32))
    ref2 = _focal_loss_ref(logits2, target2, gamma=2.0, size_average='mean')
    assert jnp.allclose(out2, ref2, rtol=2e-5, atol=1e-5), (out2, ref2)

    # 3) 2-D (M, C) classification path (classes on lanes, no HBM transpose),
    #    with a small row tile to exercise the edge-block path.
    M, C2 = 200, 16
    logits3 = jax.random.normal(k5, (M, C2), dtype=jnp.float32)
    target3 = jax.random.randint(k6, (M,), 0, C2, dtype=jnp.int32)
    out3 = jax.block_until_ready(
        focal_loss(logits3, target3, gamma=2.0, size_average='mean',
                   tile_rows=64))
    ref3 = _focal_loss_ref(logits3, target3, gamma=2.0, size_average='mean')
    assert jnp.allclose(out3, ref3, rtol=2e-5, atol=1e-5), (out3, ref3)

    print("KERNEL_OK")
</pallas_src>

<mosaic_0001>
module attributes {stable_mosaic.version = 11 : i64} {
  func.func @_focal_loss_nd_kernel(%arg0: i32, %arg1: i32, %arg2: i32, %arg3: memref<1x4x256xf32, #tpu.memory_space<vmem>>, %arg4: memref<1x1x256xi32, #tpu.memory_space<vmem>>, %arg5: memref<1x1x128xf32, #tpu.memory_space<vmem>>) attributes {dimension_semantics = [#tpu.dimension_semantics<parallel>, #tpu.dimension_semantics<parallel>, #tpu.dimension_semantics<arbitrary>], iteration_bounds = array<i64: 2, 1, 1>, scalar_prefetch = 0 : i64, scratch_operands = 0 : i64, tpu.core_type = #tpu.core_type<tc>, window_params = [{transform_indices = @transform_0, window_bounds = array<i64: 1, 4, 256>}, {transform_indices = @transform_1, window_bounds = array<i64: 1, 1, 256>}, {transform_indices = @transform_2, window_bounds = array<i64: 1, 1, 128>}]} {
    %c0_i32 = arith.constant 0 : i32
    %0 = arith.cmpi eq, %arg2, %c0_i32 : i32
    %1 = arith.extui %0 : i1 to i32
    %c0_i32_0 = arith.constant 0 : i32
    %2 = arith.cmpi ne, %1, %c0_i32_0 : i32
    scf.if %2 {
      %cst_20 = arith.constant 0.000000e+00 : f32
      %41 = vector.broadcast %cst_20 : f32 to vector<1x1x128xf32>
      %c0_21 = arith.constant 0 : index
      %c0_22 = arith.constant 0 : index
      %c0_23 = arith.constant 0 : index
      %42 = vector.load %arg5[%c0_21, %c0_22, %c0_23] : memref<1x1x128xf32, #tpu.memory_space<vmem>>, vector<1x1x128xf32>
      tpu.vector_store %arg5[%c0_21, %c0_22, %c0_23], %41 {strides = array<i32>} : memref<1x1x128xf32, #tpu.memory_space<vmem>>, vector<1x1x128xf32>,
    } else {
    }
    %c0 = arith.constant 0 : index
    %c0_1 = arith.constant 0 : index
    %c0_2 = arith.constant 0 : index
    %3 = vector.load %arg3[%c0, %c0_1, %c0_2] : memref<1x4x256xf32, #tpu.memory_space<vmem>>, vector<1x4x256xf32>
    %c0_3 = arith.constant 0 : index
    %c0_4 = arith.constant 0 : index
    %c0_5 = arith.constant 0 : index
    %4 = vector.load %arg4[%c0_3, %c0_4, %c0_5] : memref<1x1x256xi32, #tpu.memory_space<vmem>>, vector<1x1x256xi32>
    %cst = arith.constant dense<0xFF800000> : vector<1x256xf32>
    %5 = vector.multi_reduction <maximumf>, %3, %cst [1] : vector<1x4x256xf32> to vector<1x256xf32>
    %6 = vector.shape_cast %5 : vector<1x256xf32> to vector<1x1x256xf32>
    %7 = vector.broadcast %6 : vector<1x1x256xf32> to vector<1x4x256xf32>
    %8 = arith.subf %3, %7 : vector<1x4x256xf32>
    %9 = math.exp %8 : vector<1x4x256xf32>
    %cst_6 = arith.constant dense<0.000000e+00> : vector<1x256xf32>
    %10 = vector.multi_reduction <add>, %9, %cst_6 [1] : vector<1x4x256xf32> to vector<1x256xf32>
    %11 = vector.shape_cast %10 : vector<1x256xf32> to vector<1x1x256xf32>
    %12 = tpu.iota {dimensions = array<i32: 1>} : vector<1x4x1xi32>
    %13 = vector.broadcast %12 : vector<1x4x1xi32> to vector<1x4x256xi32>
    %14 = vector.broadcast %4 : vector<1x1x256xi32> to vector<1x4x256xi32>
    %15 = arith.cmpi eq, %13, %14 : vector<1x4x256xi32>
    %cst_7 = arith.constant 0.000000e+00 : f32
    %16 = vector.broadcast %cst_7 : f32 to vector<1x4x256xf32>
    %17 = arith.select %15, %8, %16 : vector<1x4x256xi1>, vector<1x4x256xf32>
    %cst_8 = arith.constant dense<0.000000e+00> : vector<1x256xf32>
    %18 = vector.multi_reduction <add>, %17, %cst_8 [1] : vector<1x4x256xf32> to vector<1x256xf32>
    %19 = vector.shape_cast %18 : vector<1x256xf32> to vector<1x1x256xf32>
    %cst_9 = arith.constant 0.000000e+00 : f32
    %20 = vector.broadcast %cst_9 : f32 to vector<1x4x256xf32>
    %21 = arith.select %15, %9, %20 : vector<1x4x256xi1>, vector<1x4x256xf32>
    %cst_10 = arith.constant dense<0.000000e+00> : vector<1x256xf32>
    %22 = vector.multi_reduction <add>, %21, %cst_10 [1] : vector<1x4x256xf32> to vector<1x256xf32>
    %23 = vector.shape_cast %22 : vector<1x256xf32> to vector<1x1x256xf32>
    %24 = math.log %11 : vector<1x1x256xf32>
    %25 = arith.subf %19, %24 : vector<1x1x256xf32>
    %26 = arith.divf %23, %11 : vector<1x1x256xf32>
    %cst_11 = arith.constant 1.000000e+00 : f32
    %27 = vector.broadcast %cst_11 : f32 to vector<1x1x256xf32>
    %28 = arith.subf %27, %26 : vector<1x1x256xf32>
    %cst_12 = arith.constant 0.000000e+00 : f32
    %29 = vector.broadcast %cst_12 : f32 to vector<1x1x256xf32>
    %30 = arith.maximumf %28, %29 : vector<1x1x256xf32>
    %31 = arith.mulf %30, %30 : vector<1x1x256xf32>
    %cst_13 = arith.constant 0.000000e+00 : f32
    %32 = vector.broadcast %cst_13 : f32 to vector<1x1x256xf32>
    %33 = arith.subf %32, %31 : vector<1x1x256xf32>
    %34 = arith.mulf %33, %25 : vector<1x1x256xf32>
    %35 = vector.extract_strided_slice %34 {offsets = [0, 0, 0], sizes = [1, 1, 128], strides = [1, 1, 1]} : vector<1x1x256xf32> to vector<1x1x128xf32>
    %36 = vector.extract_strided_slice %34 {offsets = [0, 0, 128], sizes = [1, 1, 128], strides = [1, 1, 1]} : vector<1x1x256xf32> to vector<1x1x128xf32>
    %37 = arith.addf %35, %36 : vector<1x1x128xf32>
    %c0_14 = arith.constant 0 : index
    %c0_15 = arith.constant 0 : index
    %c0_16 = arith.constant 0 : index
    %38 = vector.load %arg5[%c0_14, %c0_15, %c0_16] : memref<1x1x128xf32, #tpu.memory_space<vmem>>, vector<1x1x128xf32>
    %39 = arith.addf %38, %37 : vector<1x1x128xf32>
    %c0_17 = arith.constant 0 : index
    %c0_18 = arith.constant 0 : index
    %c0_19 = arith.constant 0 : index
    %40 = vector.load %arg5[%c0_17, %c0_18, %c0_19] : memref<1x1x128xf32, #tpu.memory_space<vmem>>, vector<1x1x128xf32>
    tpu.vector_store %arg5[%c0_17, %c0_18, %c0_19], %39 {strides = array<i32>} : memref<1x1x128xf32, #tpu.memory_space<vmem>>, vector<1x1x128xf32>,
    return
  }
  func.func @transform_0(%arg0: i32, %arg1: i32, %arg2: i32) -> (i32, i32, i32) {
    %c1_i32 = arith.constant 1 : i32
    %0 = arith.muli %arg1, %c1_i32 : i32
    %1 = arith.addi %0, %arg2 : i32
    %c0_i32 = arith.constant 0 : i32
    %2 = arith.minsi %1, %c0_i32 : i32
    %c0_i32_0 = arith.constant 0 : i32
    %c0_i32_1 = arith.constant 0 : i32
    return %arg0, %c0_i32_0, %2 : i32, i32, i32
  }
  func.func @transform_1(%arg0: i32, %arg1: i32, %arg2: i32) -> (i32, i32, i32) {
    %c1_i32 = arith.constant 1 : i32
    %0 = arith.muli %arg1, %c1_i32 : i32
    %1 = arith.addi %0, %arg2 : i32
    %c0_i32 = arith.constant 0 : i32
    %2 = arith.minsi %1, %c0_i32 : i32
    %c0_i32_0 = arith.constant 0 : i32
    %c0_i32_1 = arith.constant 0 : i32
    return %arg0, %c0_i32_0, %2 : i32, i32, i32
  }
  func.func @transform_2(%arg0: i32, %arg1: i32, %arg2: i32) -> (i32, i32, i32) {
    %c1_i32 = arith.constant 1 : i32
    %0 = arith.muli %arg0, %c1_i32 : i32
    %1 = arith.addi %0, %arg1 : i32
    %c0_i32 = arith.constant 0 : i32
    %c0_i32_0 = arith.constant 0 : i32
    %c0_i32_1 = arith.constant 0 : i32
    return %1, %c0_i32, %c0_i32_0 : i32, i32, i32
  }
}

</mosaic_0001>

<llo_original>
// kernel: tpu_custom_call.1
$region0: #{tpu_custom_call.1}
  #allocation0 [shape = 'u32[]', space=smem, size = 0x4, offset = 0x4, fixed_abs, tag = 'smem constant byte address 0x4 - core index']
  #allocation1 [shape = 'u32[144,128]{1,0:T(1,128)}', space=vmem, size = 0x12000, scoped, tag = 'internal scratch']
  %s0 = inlined_call_operand.hbm [shape: f32[2,4,256], index: 0, kind: input, shape index: {}]
  %s1 = inlined_call_operand.hbm [shape: s32[2,1,256], index: 1, kind: input, shape index: {}]
  %s2 = inlined_call_operand.hbm [shape: f32[2,1,128], index: 2, kind: output, shape index: {}]
  %s3 = sld [smem:[#allocation0]]
  $region53: #{tpu_custom_call.1} parent=0
    _
  %s5 = ssub.s32 1, %s3
  %s6 = scalar_select 0, %s5, %s3
  $region1: #{tpu_custom_call.1} parent=0
    #allocation2 [shape = 'u8[8192]{0}', space=vmem, size = 0x2000, scoped, tag = 'input window, operand 0']
    #allocation3 [shape = 's32[2]{0}', space=sflag, size = 0x8, scoped, tag = 'scoped memory for tpu_custom_call.1']
    #allocation4 [shape = 's32[2]{0}', space=sflag, size = 0x8, scoped, tag = 'scoped memory for tpu_custom_call.1']
    #allocation5 [shape = 'u8[2048]{0}', space=vmem, size = 0x800, scoped, tag = 'input window, operand 1']
    #allocation6 [shape = 's32[2]{0}', space=sflag, size = 0x8, scoped, tag = 'scoped memory for tpu_custom_call.1']
    #allocation7 [shape = 'u8[1024]{0}', space=vmem, size = 0x400, scoped, tag = 'output window, operand 0']
    %7 = vsyncpa [#allocation3], 0
    %s8 = scalar_lea.sflag [#allocation3], 1
    %9 = vsyncpa %s8, 0
    %10 = vsyncpa [#allocation6], 0
    %s11 = scalar_lea.sflag [#allocation6], 1
    %12 = vsyncpa %s11, 0
    %13 = vsyncpa [#allocation4], 0
    %s14 = scalar_lea.sflag [#allocation4], 1
    %15 = vsyncpa %s14, 0
    loop: start=0, step=1, limit=4
    $region2: #{tpu_custom_call.1} parent=1 // loop_pre_header
      _
    $region3: #{tpu_custom_call.1} parent=1 // loop_header
      %s17 = sphi 0, %s21
      %p18 = scmp.ge.s32.totalorder %s17, 4
      %s24 = sphi 0, %s43
      %s25 = sphi 0, %s39
      %s26 = sphi 0, %s35
      %s27 = sphi 0, %s24
      %s28 = sphi 0, %s25
      %s29 = sphi 0, %s26
      %s30 = sphi 0, %s27
      %s31 = sphi 0, %s28
      %s32 = sphi 0, %s29
      %s54 = sphi 0, %s56
      %s57 = sphi 0, %s54
      %s58 = sphi 0, %s57
      %s74 = sphi 0, %s58
      %s88 = sphi 0, %s90
      %s91 = sphi 0, %s88
      %s92 = sphi 0, %s91
      %s108 = sphi 0, %s92
      %s116 = sphi 0, %s118
      %s119 = sphi 0, %s116
      %s120 = sphi 0, %s119
      %s136 = sphi 0, %s120
    $region4: #{tpu_custom_call.1} parent=1 // loop_header_branch
      %20 = sbr.rel (%p18) target = $region8
    $region5: #{tpu_custom_call.1} parent=1 // loop_body
      %s22 = ssub.s32 %s17, 1
      %s23 = ssub.s32 %s17, 2
      %s33 = sadd.s32 1, %s26
      %p34 = scmp.ge.s32.totalorder %s33, 1
      %s35 = scalar_select %p34, 0, %s33
      %s36 = sadd.s32 1, %s25
      %s37 = scalar_select %p34, %s36, %s25
      %p38 = scmp.ge.s32.totalorder %s37, 1
      %s39 = scalar_select %p38, 0, %s37
      %s40 = sadd.s32 1, %s24
      %s41 = scalar_select %p38, %s40, %s24
      %p42 = scmp.ge.s32.totalorder %s41, 2
      %s43 = scalar_select %p42, 0, %s41
      %s44 = sadd.s32 %s25, %s26
      %p45 = scmp.lt.s32.totalorder %s44, 0
      %s46 = scalar_select %p45, %s44, 0
      %s47 = sadd.s32 %s39, %s35
      %p48 = scmp.lt.s32.totalorder %s47, 0
      %s49 = scalar_select %p48, %s47, 0
      %s50 = ssub.s32 %s24, %s43
      %s51 = ssub.s32 %s46, %s49
      %s52 = sor.u32 %s50, %s51
      %p53 = scmp.eq.s32.totalorder %s52, 0
      %s55 = sadd.s32 %s54, 1
      %s56 = scalar_select %p53, %s54, %s55
      %p59 = pneg %p53
      %p60 = scmp.eq.s32.totalorder %s17, 1
      %p61 = por %p59, %p60
      %p62 = scmp.ne.s32.totalorder %s54, %s57
      %p63 = scmp.eq.s32.totalorder %s17, 0
      %p64 = por %p62, %p63
      %p65 = scmp.ne.s32.totalorder %s54, %s57
      %p66 = scmp.eq.s32.totalorder %s22, 1
      %p67 = por %p65, %p66
      %p68 = scmp.ne.s32.totalorder %s57, %s58
      %p69 = scmp.eq.s32.totalorder %s22, 0
      %p70 = por %p68, %p69
      %p71 = scmp.ne.s32.totalorder %s57, %s58
      %p72 = scmp.eq.s32.totalorder %s23, 1
      %p73 = por %p71, %p72
      %p75 = scmp.ne.s32.totalorder %s58, %s74
      %p76 = scmp.eq.s32.totalorder %s23, 0
      %p77 = por %p75, %p76
      %s78 = sadd.s32 %s25, %s26
      %p79 = scmp.lt.s32.totalorder %s78, 0
      %s80 = scalar_select %p79, %s78, 0
      %s81 = sadd.s32 %s39, %s35
      %p82 = scmp.lt.s32.totalorder %s81, 0
      %s83 = scalar_select %p82, %s81, 0
      %s84 = ssub.s32 %s24, %s43
      %s85 = ssub.s32 %s80, %s83
      %s86 = sor.u32 %s84, %s85
      %p87 = scmp.eq.s32.totalorder %s86, 0
      %s89 = sadd.s32 %s88, 1
      %s90 = scalar_select %p87, %s88, %s89
      %p93 = pneg %p87
      %p94 = scmp.eq.s32.totalorder %s17, 1
      %p95 = por %p93, %p94
      %p96 = scmp.ne.s32.totalorder %s88, %s91
      %p97 = scmp.eq.s32.totalorder %s17, 0
      %p98 = por %p96, %p97
      %p99 = scmp.ne.s32.totalorder %s88, %s91
      %p100 = scmp.eq.s32.totalorder %s22, 1
      %p101 = por %p99, %p100
      %p102 = scmp.ne.s32.totalorder %s91, %s92
      %p103 = scmp.eq.s32.totalorder %s22, 0
      %p104 = por %p102, %p103
      %p105 = scmp.ne.s32.totalorder %s91, %s92
      %p106 = scmp.eq.s32.totalorder %s23, 1
      %p107 = por %p105, %p106
      %p109 = scmp.ne.s32.totalorder %s92, %s108
      %p110 = scmp.eq.s32.totalorder %s23, 0
      %p111 = por %p109, %p110
      %s112 = sadd.s32 %s24, %s25
      %s113 = sadd.s32 %s43, %s39
      %s114 = ssub.s32 %s112, %s113
      %p115 = scmp.eq.s32.totalorder %s114, 0
      %s117 = sadd.s32 %s116, 1
      %s118 = scalar_select %p115, %s116, %s117
      %p121 = pneg %p115
      %p122 = scmp.eq.s32.totalorder %s17, 1
      %p123 = por %p121, %p122
      %p124 = scmp.ne.s32.totalorder %s116, %s119
      %p125 = scmp.eq.s32.totalorder %s17, 0
      %p126 = por %p124, %p125
      %p127 = scmp.ne.s32.totalorder %s116, %s119
      %p128 = scmp.eq.s32.totalorder %s22, 1
      %p129 = por %p127, %p128
      %p130 = scmp.ne.s32.totalorder %s119, %s120
      %p131 = scmp.eq.s32.totalorder %s22, 0
      %p132 = por %p130, %p131
      %p133 = scmp.ne.s32.totalorder %s119, %s120
      %p134 = scmp.eq.s32.totalorder %s23, 1
      %p135 = por %p133, %p134
      %p137 = scmp.ne.s32.totalorder %s120, %s136
      %p138 = scmp.eq.s32.totalorder %s23, 0
      %p139 = por %p137, %p138
      %p140 = scmp.le.s32.totalorder 1, %s17
      %p141 = scmp.lt.s32.totalorder %s17, 3
      %p142 = pnand %p140, %p141
      %p143 = pneg %p142
      // Predicated region
      $region9: #{tpu_custom_call.1} parent=5 // pred_check
        _
      $region10: #{tpu_custom_call.1} parent=5 // pred_check_branch
        %145 = sbr.rel (%p142) target = $region12
      $region11: #{tpu_custom_call.1} parent=5 // pred_region
        %s146 = ssub.s32 %s17, 1
      $region12: #{tpu_custom_call.1} parent=5 // pred_fallthru
        _
      %p147 = scmp.lt.s32.totalorder %s17, 2
      // Predicated region
      $region13: #{tpu_custom_call.1} parent=5 // pred_check
        %p148 = pneg %p147
      $region14: #{tpu_custom_call.1} parent=5 // pred_check_branch
        %150 = sbr.rel (%p148) target = $region16
      $region15: #{tpu_custom_call.1} parent=5 // pred_region
        // Predicated region
        $region17: #{tpu_custom_call.1} parent=15 // pred_check
          %p151 = pneg %p64
        $region18: #{tpu_custom_call.1} parent=15 // pred_check_branch
          %153 = sbr.rel (%p151) target = $region20
        $region19: #{tpu_custom_call.1} parent=15 // pred_region
          %s154 = sand.u32 %s54, 1
          %s155 = scalar_lea.sflag [#allocation3], %s154
          %s156 = sand.u32 %s54, 1
          %s157 = smul.addr %s156, 8
          %s158 = scalar_lea.vmem [#allocation2], %s157
          %s159 = sadd.s32 %s25, %s26
          %p160 = scmp.lt.s32.totalorder %s159, 0
          %s161 = scalar_select %p160, %s159, 0
          %s162 = smul.u32 2, %s161
          %s164 = ssub.s32 128, 128
          %165 = vsyncadd %s155, %s164
          %s166 = smul.addr %s24, 2
          %s167 = sadd.s32 %s162, %s166
          %s168 = smul.addr %s167, 64
          %s169 = scalar_lea.hbm %s0, %s168
          %s171 = sshll.u32 %s158, 4
          %s172 = int_to_ptr.vmem [resolvable:$true] %s171
          %174 = dma.hbm_to_vmem [thread:$0]  %s169, 128, %s172, %s155
        $region20: #{tpu_custom_call.1} parent=15 // pred_fallthru
          _
        // Predicated region
        $region21: #{tpu_custom_call.1} parent=15 // pred_check
          %p175 = pneg %p98
        $region22: #{tpu_custom_call.1} parent=15 // pred_check_branch
          %177 = sbr.rel (%p175) target = $region24
        $region23: #{tpu_custom_call.1} parent=15 // pred_region
          %s178 = sand.u32 %s88, 1
          %s179 = scalar_lea.sflag [#allocation6], %s178
          %s180 = sand.u32 %s88, 1
          %s181 = smul.addr %s180, 2
          %s182 = scalar_lea.vmem [#allocation5], %s181
          %s183 = sadd.s32 %s25, %s26
          %p184 = scmp.lt.s32.totalorder %s183, 0
          %s185 = scalar_select %p184, %s183, 0
          %s186 = smul.u32 2, %s185
          %s188 = ssub.s32 32, 32
          %189 = vsyncadd %s179, %s188
          %s190 = smul.addr %s24, 2
          %s191 = sadd.s32 %s186, %s190
          %s192 = smul.addr %s191, 16
          %s193 = scalar_lea.hbm %s1, %s192
          %s195 = sshll.u32 %s182, 4
          %s196 = int_to_ptr.vmem [resolvable:$true] %s195
          %198 = dma.hbm_to_vmem [thread:$0]  %s193, 32, %s196, %s179
        $region24: #{tpu_custom_call.1} parent=15 // pred_fallthru
          _
      $region16: #{tpu_custom_call.1} parent=5 // pred_fallthru
        _
      %p199 = scmp.le.s32.totalorder 1, %s17
      %p200 = scmp.lt.s32.totalorder %s17, 3
      %p201 = pnand %p199, %p200
      %p202 = pneg %p201
      // Predicated region
      $region25: #{tpu_custom_call.1} parent=5 // pred_check
        _
      $region26: #{tpu_custom_call.1} parent=5 // pred_check_branch
        %204 = sbr.rel (%p201) target = $region28
      $region27: #{tpu_custom_call.1} parent=5 // pred_region
        %s205 = ssub.s32 %s17, 1
        %s206 = sand.u32 %s57, 1
        %s207 = scalar_lea.sflag [#allocation3], %s206
        %s208 = sand.u32 %s57, 1
        %s209 = smul.addr %s208, 8
        %s210 = scalar_lea.vmem [#allocation2], %s209
        // Predicated region
        $region29: #{tpu_custom_call.1} parent=27 // pred_check
          %p211 = pneg %p70
        $region30: #{tpu_custom_call.1} parent=27 // pred_check_branch
          %213 = sbr.rel (%p211) target = $region32
        $region31: #{tpu_custom_call.1} parent=27 // pred_region
          %214 = dma.done %s207, 128
        $region32: #{tpu_custom_call.1} parent=27 // pred_fallthru
          _
        %s215 = sand.u32 %s91, 1
        %s216 = scalar_lea.sflag [#allocation6], %s215
        %s217 = sand.u32 %s91, 1
        %s218 = smul.addr %s217, 2
        %s219 = scalar_lea.vmem [#allocation5], %s218
        // Predicated region
        $region33: #{tpu_custom_call.1} parent=27 // pred_check
          %p220 = pneg %p104
        $region34: #{tpu_custom_call.1} parent=27 // pred_check_branch
          %222 = sbr.rel (%p220) target = $region36
        $region35: #{tpu_custom_call.1} parent=27 // pred_region
          %223 = dma.done %s216, 32
        $region36: #{tpu_custom_call.1} parent=27 // pred_fallthru
          _
        %s224 = sand.u32 %s57, 1
        %s225 = scalar_lea.sflag [#allocation3], %s224
        %s226 = sand.u32 %s57, 1
        %s227 = smul.addr %s226, 8
        %s228 = scalar_lea.vmem [#allocation2], %s227
        %p229 = pneg %p70
        %p230 = pneg %p67
        %s231 = sand.u32 %s91, 1
        %s232 = scalar_lea.sflag [#allocation6], %s231
        %s233 = sand.u32 %s91, 1
        %s234 = smul.addr %s233, 2
        %s235 = scalar_lea.vmem [#allocation5], %s234
        %p236 = pneg %p104
        %p237 = pneg %p101
        %p238 = pneg %p132
        %p239 = pneg %p129
        %s240 = sand.u32 %s119, 1
        %s241 = scalar_lea.sflag [#allocation4], %s240
        %s242 = sand.u32 %s119, 1
        %s243 = scalar_lea.vmem [#allocation7], %s242
        %s244 = sadd.s32 %s28, %s29
        %p245 = scmp.lt.s32.totalorder %s244, 0
        %s246 = scalar_select %p245, %s244, 0
        %s247 = smul.u32 2, %s246
        %s248 = sadd.s32 %s28, %s29
        %p249 = scmp.lt.s32.totalorder %s248, 0
        %s250 = scalar_select %p249, %s248, 0
        %s251 = smul.u32 2, %s250
        %s252 = sadd.s32 %s27, %s28
        %p253 = scmp.eq.s32.totalorder %s29, 0
        // Predicated region
        $region37: #{tpu_custom_call.1} parent=27 // pred_check
          %p254 = pneg %p253
        $region38: #{tpu_custom_call.1} parent=27 // pred_check_branch
          %256 = sbr.rel (%p254) target = $region40
        $region39: #{tpu_custom_call.1} parent=27 // pred_region
          %257 = vst [vmem:[%s243] sm:$0x1] 0.0
        $region40: #{tpu_custom_call.1} parent=27 // pred_fallthru
          _
        %v258 = vld [vmem:[%s210] sm:$0xff]
        %v259 = vld [vmem:[%s219] sm:$0x3]
        %v261 = vcombine.high %v258, %v258
        %vm263 = vcmask 1043456
        %v264 = vsel %vm263, %v258, -inf
        %v265 = vrot.slane %v264, 4
        %v266 = vmax.f32 %v264, %v265
        %v267 = vrot.slane %v266, 2
        %v268 = vmax.f32 %v266, %v267
        %v269 = vrot.slane %v268, 1
        %v270 = vmax.f32 %v268, %v269
        %v271 = vsel %vm263, %v261, -inf
        %v272 = vrot.slane %v271, 4
        %v273 = vmax.f32 %v271, %v272
        %v274 = vrot.slane %v273, 2
        %v275 = vmax.f32 %v273, %v274
        %v276 = vrot.slane %v275, 1
        %v277 = vmax.f32 %v275, %v276
        %v280 = vcombine.low %v270, %v277
        %v282 = vsub.f32 %v258, %v280
        %v283 = vmul.f32 %v282, 1.442695
        %v284 = vpow.pop %v283
        %v286 = vcombine.high %v284, %v284
        %v288 = vsel %vm263, %v284, 0.0
        %v289 = vrot.slane %v288, 4
        %v290 = vadd.f32 %v288, %v289
        %v291 = vrot.slane %v290, 2
        %v292 = vadd.f32 %v290, %v291
        %v293 = vrot.slane %v292, 1
        %v294 = vadd.f32 %v292, %v293
        %v295 = vsel %vm263, %v286, 0.0
        %v296 = vrot.slane %v295, 4
        %v297 = vadd.f32 %v295, %v296
        %v298 = vrot.slane %v297, 2
        %v299 = vadd.f32 %v297, %v298
        %v300 = vrot.slane %v299, 1
        %v301 = vadd.f32 %v299, %v300
        %v302 = vlaneseq
        %v303 = vshrl.u32 %v302, 7
        %v304 = vlaneseq
        %v305 = vshrl.u32 %v304, 7
        %v306 = vsub.s32 0, %v305
        %v307 = vrot.slane %v259, %v306
        %v308 = vlaneseq
        %v309 = vshrl.u32 %v308, 7
        %v310 = vsub.s32 1, %v309
        %v311 = vrot.slane %v259, %v310
        %vm312 = vcmp.eq.s32.totalorder %v303, %v307
        %vm313 = vcmp.eq.s32.totalorder %v303, %v311
        %v315 = vcombine.high %v282, %v282
        %v317 = vsel %vm312, %v282, 0.0
        %v318 = vsel %vm313, %v315, 0.0
        %v319 = vsel %vm263, %v317, 0.0
        %v320 = vrot.slane %v319, 4
        %v321 = vadd.f32 %v319, %v320
        %v322 = vrot.slane %v321, 2
        %v323 = vadd.f32 %v321, %v322
        %v324 = vrot.slane %v323, 1
        %v325 = vadd.f32 %v323, %v324
        %v326 = vsel %vm263, %v318, 0.0
        %v327 = vrot.slane %v326, 4
        %v328 = vadd.f32 %v326, %v327
        %v329 = vrot.slane %v328, 2
        %v330 = vadd.f32 %v328, %v329
        %v331 = vrot.slane %v330, 1
        %v332 = vadd.f32 %v330, %v331
        %v333 = vsel %vm312, %v284, 0.0
        %v334 = vsel %vm313, %v286, 0.0
        %v335 = vsel %vm263, %v333, 0.0
        %v336 = vrot.slane %v335, 4
        %v337 = vadd.f32 %v335, %v336
        %v338 = vrot.slane %v337, 2
        %v339 = vadd.f32 %v337, %v338
        %v340 = vrot.slane %v339, 1
        %v341 = vadd.f32 %v339, %v340
        %v342 = vsel %vm263, %v334, 0.0
        %v343 = vrot.slane %v342, 4
        %v344 = vadd.f32 %v342, %v343
        %v345 = vrot.slane %v344, 2
        %v346 = vadd.f32 %v344, %v345
        %v347 = vrot.slane %v346, 1
        %v348 = vadd.f32 %v346, %v347
        %v349 = vlog2.pop %v294
        %v350 = vmul.f32 %v349, 0.6931472
        %v351 = vlog2.pop %v301
        %v352 = vmul.f32 %v351, 0.6931472
        %v353 = vsub.f32 %v325, %v350
        %v354 = vsub.f32 %v332, %v352
        %v355 = vrcp.pop %v294
        %v356 = vmul.f32 %v341, %v355
        %v357 = vrcp.pop %v301
        %v358 = vmul.f32 %v348, %v357
        %v359 = vsub.f32 1.0, %v356
        %v360 = vsub.f32 1.0, %v358
        %v361 = vmax.f32 %v359, 0.0
        %v362 = vmax.f32 %v360, 0.0
        %v363 = vmul.f32 %v361, %v361
        %v364 = vmul.f32 %v362, %v362
        %v365 = vsub.f32 0.0, %v363
        %v366 = vsub.f32 0.0, %v364
        %v367 = vmul.f32 %v365, %v353
        %v368 = vmul.f32 %v366, %v354
        %v369 = vadd.f32 %v367, %v368
        %v370 = vld [vmem:[%s243] sm:$0x1]
        %v371 = vadd.f32 %v370, %v369
        %372 = vst [vmem:[%s243] sm:$0x1] %v371
        %s373 = sand.u32 %s119, 1
        %s374 = scalar_lea.sflag [#allocation4], %s373
        %s375 = sand.u32 %s119, 1
        %s376 = scalar_lea.vmem [#allocation7], %s375
        // Predicated region
        $region41: #{tpu_custom_call.1} parent=27 // pred_check
          %p377 = pneg %p129
        $region42: #{tpu_custom_call.1} parent=27 // pred_check_branch
          %379 = sbr.rel (%p377) target = $region44
        $region43: #{tpu_custom_call.1} parent=27 // pred_region
          %s380 = sadd.s32 %s27, %s28
          %s382 = ssub.s32 16, 16
          %383 = vsyncadd %s374, %s382
          %s384 = smul.addr %s380, 16
          %s385 = scalar_lea.hbm %s2, %s384
          %s387 = sshll.u32 %s376, 4
          %s388 = int_to_ptr.vmem [resolvable:$true] %s387
          %390 = dma.vmem_to_hbm [thread:$0]  %s388, 16, %s385, %s374
        $region44: #{tpu_custom_call.1} parent=27 // pred_fallthru
          _
      $region28: #{tpu_custom_call.1} parent=5 // pred_fallthru
        _
      %p391 = scmp.le.s32.totalorder 2, %s17
      // Predicated region
      $region45: #{tpu_custom_call.1} parent=5 // pred_check
        %p392 = pneg %p391
      $region46: #{tpu_custom_call.1} parent=5 // pred_check_branch
        %394 = sbr.rel (%p392) target = $region48
      $region47: #{tpu_custom_call.1} parent=5 // pred_region
        %s395 = ssub.s32 %s17, 2
        // Predicated region
        $region49: #{tpu_custom_call.1} parent=47 // pred_check
          %p396 = pneg %p135
        $region50: #{tpu_custom_call.1} parent=47 // pred_check_branch
          %398 = sbr.rel (%p396) target = $region52
        $region51: #{tpu_custom_call.1} parent=47 // pred_region
          %s399 = sand.u32 %s120, 1
          %s400 = scalar_lea.sflag [#allocation4], %s399
          %s401 = sand.u32 %s120, 1
          %s402 = scalar_lea.vmem [#allocation7], %s401
          %403 = dma.done %s400, 16
        $region52: #{tpu_custom_call.1} parent=47 // pred_fallthru
          _
      $region48: #{tpu_custom_call.1} parent=5 // pred_fallthru
        _
    $region6: #{tpu_custom_call.1} parent=1 // loop_footer
      %s21 = sadd.s32 1, %s17
    $region7: #{tpu_custom_call.1} parent=1 // loop_footer_branch
      %16 = sbr.rel target = $region3
    $region8: #{tpu_custom_call.1} parent=1 // loop_exit
      _
    %404 = vsyncpa [#allocation3], 1
    %s405 = scalar_lea.sflag [#allocation3], 1
    %406 = vsyncpa %s405, 1
    %407 = vsyncpa [#allocation6], 1
    %s408 = scalar_lea.sflag [#allocation6], 1
    %409 = vsyncpa %s408, 1
    %410 = vsyncpa [#allocation4], 1
    %s411 = scalar_lea.sflag [#allocation4], 1
    %412 = vsyncpa %s411, 1

</llo_original>
